<compile_context>
chip_gen: v5e
topology: v5e:2x2
jax: 0.10.0
libtpu: 0.0.40
codegen_flags: <defaults>
</compile_context>

<pallas_src>
import math

import jax
import jax.numpy as jnp
from jax.experimental import pallas as pl
from jax.experimental.pallas import tpu as pltpu

DOT_DTYPE = jnp.bfloat16   # MXU operand dtype; accumulation is always f32
LANE = 128


# --------------------------------------------------------------------------
# helpers
# --------------------------------------------------------------------------

def _full_spec(shape):
    return pl.BlockSpec(shape, lambda *_: (0,) * len(shape))


def _pack_biases(bias_list):
    """Concat 1-D f32 biases into one (1, T) buffer; every segment 128-aligned."""
    parts, offs, off = [], [], 0
    for b in bias_list:
        w = int(b.shape[0])
        wpad = -(-w // LANE) * LANE
        offs.append((off, w))
        parts.append(jnp.pad(b.astype(jnp.float32), (0, wpad - w)))
        off += wpad
    return jnp.concatenate(parts).reshape(1, -1), offs


def _vmem_limit(nbytes):
    # generous headroom; capped at v7x's 64 MiB physical VMEM so the same
    # config compiles on v5e/v6e/v7x.
    return int(min(64 * 1024 * 1024, max(8 * 1024 * 1024, 4 * int(nbytes))))


def _init_linear(key, fan_in, fan_out, bias=True):
    k1, k2 = jax.random.split(key)
    bound = 1.0 / math.sqrt(float(fan_in))
    w = jax.random.uniform(k1, (fan_in, fan_out), jnp.float32, -bound, bound)
    b = (jax.random.uniform(k2, (fan_out,), jnp.float32, -bound, bound)
         if bias else None)
    return w, b


def _pad_final(w, b, d):
    """Place the [a | mu] column split at lane-aligned offsets 0 and LANE."""
    assert d <= LANE
    fan_in = w.shape[0]
    wpad = jnp.zeros((fan_in, 2 * LANE), jnp.float32)
    wpad = wpad.at[:, :d].set(w[:, :d]).at[:, LANE:LANE + d].set(w[:, d:])
    bpad = jnp.zeros((2 * LANE,), jnp.float32)
    bpad = bpad.at[:d].set(b[:d]).at[LANE:LANE + d].set(b[d:])
    return wpad, bpad


# --------------------------------------------------------------------------
# Kernel 1: per-graph GraphConv stack + fused pool / gather selector matmul
# --------------------------------------------------------------------------

def _make_conv_pool_kernel(n_conv, cb_off, n_max, dot_dtype):
    def kernel(*refs):
        it = iter(refs)
        meta_ref = next(it)                              # (B, 4) int32, SMEM
        adj_ref = next(it)                               # (1, n_max, n_max) bf16
        x_ref = next(it)                                 # (1, n_max, in_pad) bf16
        conv_ws = [(next(it), next(it)) for _ in range(n_conv)]   # (wrel, wroot)
        cbias_ref = next(it)                             # (1, Tc) f32, coalesced
        out_ref = next(it)                               # (1, 3, gd) bf16

        g = pl.program_id(0)
        adj = adj_ref[0]                                 # (n_max, n_max)
        h = x_ref[0]                                     # (n_max, in_pad) bf16

        # PyG GraphConv(add): lin_rel(sum_{src->dst} x_src) + lin_root(x_dst)
        for li, (wrel_ref, wroot_ref) in enumerate(conv_ws):
            agg = jnp.dot(adj, h, preferred_element_type=jnp.float32)
            off, w = cb_off[li]
            y = (jnp.dot(agg.astype(dot_dtype), wrel_ref[...],
                         preferred_element_type=jnp.float32)
                 + jnp.dot(h, wroot_ref[...],
                           preferred_element_type=jnp.float32)
                 + cbias_ref[:, off:off + w])
            # LeakyReLU(0.01) in f32, store activation as bf16 once
            h = jnp.maximum(y, 0.01 * y).astype(dot_dtype)

        # fused selector: row0 = valid-node pool mask, row1/row2 = idi/idj one-hots
        nv = meta_ref[g, 0]
        ii = meta_ref[g, 1]
        jj = meta_ref[g, 2]
        rowid = jax.lax.broadcasted_iota(jnp.int32, (8, n_max), 0)
        nid = jax.lax.broadcasted_iota(jnp.int32, (8, n_max), 1)
        sel = (((rowid == 0) & (nid < nv))
               | ((rowid == 1) & (nid == ii))
               | ((rowid == 2) & (nid == jj))).astype(dot_dtype)
        res = jnp.dot(sel, h, preferred_element_type=jnp.float32)   # (8, gd)
        out_ref[0] = res[0:3].astype(out_ref.dtype)
    return kernel


# --------------------------------------------------------------------------
# Kernel 2: node MLP + edge MLP + flow loss (tiny, gridless)
# --------------------------------------------------------------------------

def _make_head_kernel(n_node_lin, n_edge_lin, b_off, g_x, g_a, gd,
                      out_dim, e_out_dim, dot_dtype):
    def kernel(*refs):
        it = iter(refs)
        feat_ref = next(it)                              # (B, 3*gd) bf16
        yx_ref = next(it)                                # (Gx, out_dim) f32
        yA_ref = next(it)                                # (GA, 1) f32
        node_w = [next(it) for _ in range(n_node_lin)]
        edge_w = [next(it) for _ in range(n_edge_lin)]
        bias_ref = next(it)                              # (1, Th) f32, coalesced
        lossx_ref = next(it)
        lossA_ref = next(it)

        feat = feat_ref[...]
        pooled_x = feat[0:g_x, 0:gd]                     # read_g_x         (bf16)
        use_A = feat[g_x:, :]                            # cat([read_g_A, x_i, x_j])

        def bias(k):
            off, w = b_off[k]
            return bias_ref[:, off:off + w]

        bidx = 0
        h = pooled_x
        for li, w_ref in enumerate(node_w):
            y = jnp.dot(h, w_ref[...], preferred_element_type=jnp.float32) + bias(bidx)
            bidx += 1
            if li < n_node_lin - 1:
                h = jnp.tanh(y).astype(dot_dtype)
            else:
                yo_x = y                                 # (Gx, 2*LANE) f32

        h = use_A
        for li, w_ref in enumerate(edge_w):
            y = jnp.dot(h, w_ref[...], preferred_element_type=jnp.float32) + bias(bidx)
            bidx += 1
            if li < n_edge_lin - 1:
                h = jnp.tanh(y).astype(dot_dtype)
            else:
                yo_A = y                                 # (GA, 2*LANE) f32

        # loss: a = araw^2 + 1e-7 ; eps = (y - mu)/a ; loss = eps^2 + log(a)
        araw_x = yo_x[:, 0:out_dim]
        mu_x = yo_x[:, LANE:LANE + out_dim]
        a_x = araw_x * araw_x + 1e-7
        eps_x = (yx_ref[...] - mu_x) * pl.reciprocal(a_x, approx=False)
        lossx_ref[...] = eps_x * eps_x + jnp.log(a_x)

        araw_A = yo_A[:, 0:e_out_dim]
        mu_A = yo_A[:, LANE:LANE + e_out_dim]
        a_A = araw_A * araw_A + 1e-7
        eps_A = (yA_ref[...] - mu_A) * pl.reciprocal(a_A, approx=False)
        lossA_ref[...] = eps_A * eps_A + jnp.log(a_A)
    return kernel


# --------------------------------------------------------------------------
# Parameters (all pads / splits / bias packing hoisted into init)
# --------------------------------------------------------------------------

def init_graphaf_params(key, in_dim=2, convs=(128, 256), node_layers=(256, 512),
                        edge_layers=(256, 512), out_dim=None, e_out_dim=1):
    if out_dim is None:
        out_dim = in_dim
    assert out_dim <= LANE and e_out_dim <= LANE
    in_pad = max(in_dim, LANE)
    params = {"out_dim": out_dim, "e_out_dim": e_out_dim, "in_pad": in_pad}

    # GraphConv stack (lin_rel has bias, lin_root has no bias, as in PyG)
    conv_ws, conv_bs = [], []
    pre = in_dim
    for li, c in enumerate(convs):
        key, k1, k2 = jax.random.split(key, 3)
        wrel, brel = _init_linear(k1, pre, c, bias=True)
        wroot, _ = _init_linear(k2, pre, c, bias=False)
        if li == 0 and in_pad > pre:
            wrel = jnp.pad(wrel, ((0, in_pad - pre), (0, 0)))
            wroot = jnp.pad(wroot, ((0, in_pad - pre), (0, 0)))
        conv_ws.append((wrel.astype(DOT_DTYPE), wroot.astype(DOT_DTYPE)))
        conv_bs.append(brel)
        pre = c
    graph_dim = pre
    params["convs"] = conv_ws
    params["conv_bias"], params["conv_b_off"] = _pack_biases(conv_bs)
    params["graph_dim"] = graph_dim

    # node MLP
    node_ws, head_bs = [], []
    pre = graph_dim
    for hdim in node_layers:
        key, k1 = jax.random.split(key)
        w, b = _init_linear(k1, pre, hdim)
        node_ws.append(w.astype(DOT_DTYPE))
        head_bs.append(b)
        pre = hdim
    key, k1 = jax.random.split(key)
    w, b = _init_linear(k1, pre, out_dim * 2)
    wf, bf = _pad_final(w, b, out_dim)
    node_ws.append(wf.astype(DOT_DTYPE))
    head_bs.append(bf)
    params["node_ws"] = node_ws

    # edge MLP; first layer consumes cat([read_g_A, x_i, x_j]) = 3*graph_dim
    edge_ws = []
    pre = 3 * graph_dim
    for hdim in edge_layers:
        key, k1 = jax.random.split(key)
        w, b = _init_linear(k1, pre, hdim)
        edge_ws.append(w.astype(DOT_DTYPE))
        head_bs.append(b)
        pre = hdim
    key, k1 = jax.random.split(key)
    w, b = _init_linear(k1, pre, e_out_dim * 2)
    wf, bf = _pad_final(w, b, e_out_dim)
    edge_ws.append(wf.astype(DOT_DTYPE))
    head_bs.append(bf)
    params["edge_ws"] = edge_ws
    params["head_bias"], params["head_b_off"] = _pack_biases(head_bs)
    return params


# --------------------------------------------------------------------------
# host-side per-graph packing (setup)
# --------------------------------------------------------------------------

def _pack_graphs(data, n_max, in_pad, num_graphs):
    x = jnp.asarray(data["x"], jnp.float32)
    ei = jnp.asarray(data["edge_index"], jnp.int32)
    batch = jnp.asarray(data["batch"], jnp.int32)
    n = x.shape[0]
    counts = jnp.zeros((num_graphs,), jnp.int32).at[batch].add(1)
    offsets = jnp.concatenate([jnp.zeros((1,), jnp.int32), jnp.cumsum(counts)[:-1]])
    local = jnp.arange(n, dtype=jnp.int32) - offsets[batch]

    xf = x.astype(DOT_DTYPE)
    if xf.shape[1] < in_pad:
        xf = jnp.pad(xf, ((0, 0), (0, in_pad - xf.shape[1])))
    xp = jnp.zeros((num_graphs, n_max, in_pad), DOT_DTYPE).at[batch, local].set(xf)

    src, dst = ei[0], ei[1]
    eb = batch[src]
    # Adj[g, dst_local, src_local] += 1 ; built directly in bf16 (exact < 256)
    adj = jnp.zeros((num_graphs, n_max, n_max), DOT_DTYPE)
    adj = adj.at[eb, dst - offsets[eb], src - offsets[eb]].add(
        jnp.ones(src.shape, DOT_DTYPE))
    return adj, xp, counts, offsets, batch


# --------------------------------------------------------------------------
# GraphAF forward (matches the PyTorch module's forward(); add_bn=False path)
# --------------------------------------------------------------------------

def graphaf_forward(params, inputs, n_max=None):
    gd = params["graph_dim"]
    out_dim, e_out_dim, in_pad = params["out_dim"], params["e_out_dim"], params["in_pad"]
    dx, dA = inputs["data_x"], inputs["data_A"]
    g_x, g_a = int(dx["num_graphs"]), int(dA["num_graphs"])
    batch_size = g_x + g_a

    cx = jnp.zeros((g_x,), jnp.int32).at[jnp.asarray(dx["batch"], jnp.int32)].add(1)
    ca = jnp.zeros((g_a,), jnp.int32).at[jnp.asarray(dA["batch"], jnp.int32)].add(1)
    if n_max is None:
        # needs concrete values; pass n_max explicitly when jitting the wrapper
        n_max = int(jnp.maximum(jnp.max(cx), jnp.max(ca)))
    n_max = max(8, -(-int(n_max) // 8) * 8)

    adj_x, xp_x, cx, _, _ = _pack_graphs(dx, n_max, in_pad, g_x)
    adj_a, xp_a, ca, off_a, b_a = _pack_graphs(dA, n_max, in_pad, g_a)
    adj = jnp.concatenate([adj_x, adj_a], axis=0)          # (B, n_max, n_max) bf16
    xp = jnp.concatenate([xp_x, xp_a], axis=0)              # (B, n_max, in_pad) bf16

    idi = jnp.asarray(inputs["idi_A"], jnp.int32).reshape(-1)
    idj = jnp.asarray(inputs["idj_A"], jnp.int32).reshape(-1)
    assert idi.shape[0] == g_a and idj.shape[0] == g_a, \
        "expect exactly one (idi, idj) pair per data_A graph"
    # TODO(synk): (idi, idj) nodes are assumed to lie in their own graph (true
    # for GraphAF autoregressive batching); cross-graph gathers would need the
    # flat-batch layout.
    idi_l = idi - off_a[b_a[idi]]
    idj_l = idj - off_a[b_a[idj]]

    meta = jnp.zeros((batch_size, 4), jnp.int32)
    meta = meta.at[:g_x, 0].set(cx).at[g_x:, 0].set(ca)
    meta = meta.at[g_x:, 1].set(idi_l).at[g_x:, 2].set(idj_l)

    conv_flat = []
    for wrel, wroot in params["convs"]:
        conv_flat += [wrel, wroot]
    cbias = params["conv_bias"]

    # ---- kernel 1: per-graph conv stack + pool/gather, parallel grid over B ----
    kernel1 = _make_conv_pool_kernel(len(params["convs"]), params["conv_b_off"],
                                     n_max, DOT_DTYPE)
    blk_bytes = (n_max * n_max * 2 + n_max * in_pad * 2 + 3 * gd * 2) * 2
    wt_bytes = sum(int(w.nbytes) for w in conv_flat) + int(cbias.nbytes)
    interm_bytes = n_max * 1024 * 4 * 8
    flops1, d = 0, in_pad
    for wrel, _ in params["convs"]:
        c = wrel.shape[1]
        flops1 += batch_size * (2 * n_max * n_max * d + 4 * n_max * d * c)
        d = c
    flops1 += batch_size * 2 * 8 * n_max * gd
    bytes1 = (int(adj.nbytes) + int(xp.nbytes) + int(meta.nbytes) + wt_bytes
              + batch_size * 3 * gd * 2)

    feat = pl.pallas_call(
        kernel1,
        out_shape=jax.ShapeDtypeStruct((batch_size, 3, gd), DOT_DTYPE),
        grid_spec=pltpu.PrefetchScalarGridSpec(
            num_scalar_prefetch=1,
            grid=(batch_size,),
            in_specs=[pl.BlockSpec((1, n_max, n_max), lambda g, m: (g, 0, 0)),
                      pl.BlockSpec((1, n_max, in_pad), lambda g, m: (g, 0, 0))]
                     + [_full_spec(w.shape) for w in conv_flat]
                     + [_full_spec(cbias.shape)],
            out_specs=pl.BlockSpec((1, 3, gd), lambda g, m: (g, 0, 0)),
        ),
        compiler_params=pltpu.CompilerParams(
            dimension_semantics=("parallel",),
            vmem_limit_bytes=_vmem_limit(blk_bytes + 2 * wt_bytes + interm_bytes)),
        cost_estimate=pl.CostEstimate(flops=int(flops1), transcendentals=0,
                                      bytes_accessed=int(bytes1)),
    )(meta, adj, xp, *conv_flat, cbias)

    # free (row-major compatible) reshape: pooled row == cat([pool, x_i, x_j])
    feat2 = feat.reshape(batch_size, 3 * gd)

    # ---- kernel 2: node MLP + edge MLP + flow loss ----
    y_x = jnp.asarray(inputs["y_x"], jnp.float32)
    y_a = jnp.asarray(inputs["y_A"], jnp.float32).reshape(-1, 1)
    node_ws, edge_ws, hbias = params["node_ws"], params["edge_ws"], params["head_bias"]

    kernel2 = _make_head_kernel(len(node_ws), len(edge_ws), params["head_b_off"],
                                g_x, g_a, gd, out_dim, e_out_dim, DOT_DTYPE)
    head_ops = [feat2, y_x, y_a] + node_ws + edge_ws + [hbias]
    out_shape = (jax.ShapeDtypeStruct((g_x, out_dim), jnp.float32),
                 jax.ShapeDtypeStruct((g_a, e_out_dim), jnp.float32))
    nbytes2 = sum(int(a.nbytes) for a in head_ops) + batch_size * 1024 * 4 * 4
    flops2 = (sum(2 * g_x * w.shape[0] * w.shape[1] for w in node_ws)
              + sum(2 * g_a * w.shape[0] * w.shape[1] for w in edge_ws))
    trans2 = (g_x * (sum(w.shape[1] for w in node_ws[:-1]) + out_dim)
              + g_a * (sum(w.shape[1] for w in edge_ws[:-1]) + e_out_dim))

    loss_x, loss_a = pl.pallas_call(
        kernel2,
        out_shape=out_shape,
        in_specs=[_full_spec(a.shape) for a in head_ops],
        out_specs=tuple(_full_spec(s.shape) for s in out_shape),
        compiler_params=pltpu.CompilerParams(vmem_limit_bytes=_vmem_limit(nbytes2)),
        cost_estimate=pl.CostEstimate(flops=int(flops2), transcendentals=int(trans2),
                                      bytes_accessed=int(nbytes2)),
    )(*head_ops)

    # TODO(synk): load_outx / load_outA / generate() are host-side autoregressive
    # sampling loops with data-dependent graph growth; not kernelized here.
    return loss_x, loss_a


# --------------------------------------------------------------------------
# Example run
# --------------------------------------------------------------------------

if __name__ == "__main__":
    key = jax.random.PRNGKey(0)
    key, kp, kx1, kx2, ky1, ky2 = jax.random.split(key, 6)

    in_dim, out_dim, e_out_dim = 2, 2, 1
    num_graphs, nodes_per_graph = 4, 4
    n_nodes = num_graphs * nodes_per_graph  # 16

    params = init_graphaf_params(kp, in_dim=in_dim, out_dim=out_dim,
                                 e_out_dim=e_out_dim)

    def ring_edges(ng, npg):
        src, dst = [], []
        for g in range(ng):
            off = g * npg
            for a in range(npg):
                b = (a + 1) % npg
                src += [off + a, off + b]
                dst += [off + b, off + a]
        return jnp.array([src, dst], dtype=jnp.int32)

    batch = jnp.repeat(jnp.arange(num_graphs, dtype=jnp.int32), nodes_per_graph)
    edge_index = ring_edges(num_graphs, nodes_per_graph)

    inputs = {
        "data_x": {
            "x": jax.random.normal(kx1, (n_nodes, in_dim), jnp.float32),
            "edge_index": edge_index,
            "batch": batch,
            "num_graphs": num_graphs,
        },
        "data_A": {
            "x": jax.random.normal(kx2, (n_nodes, in_dim), jnp.float32),
            "edge_index": edge_index,
            "batch": batch,
            "num_graphs": num_graphs,
        },
        "y_x": jax.random.normal(ky1, (num_graphs, out_dim), jnp.float32),
        "y_A": jax.random.normal(ky2, (num_graphs,), jnp.float32),
        "idi_A": jnp.array([g * nodes_per_graph + 2 for g in range(num_graphs)],
                           dtype=jnp.int32),
        "idj_A": jnp.array([g * nodes_per_graph + 0 for g in range(num_graphs)],
                           dtype=jnp.int32),
    }

    loss_x, loss_A = graphaf_forward(params, inputs)
    jax.block_until_ready((loss_x, loss_A))
    assert loss_x.shape == (num_graphs, out_dim)
    assert loss_A.shape == (num_graphs, e_out_dim)
    assert bool(jnp.all(jnp.isfinite(loss_x)))
    assert bool(jnp.all(jnp.isfinite(loss_A)))
    print("KERNEL_OK")
</pallas_src>

<mosaic_0001>
module attributes {stable_mosaic.version = 11 : i64} {
  func.func @kernel(%arg0: i32, %arg1: memref<8x4xi32, #tpu.memory_space<smem>>, %arg2: memref<1x8x8xbf16, #tpu.memory_space<vmem>>, %arg3: memref<1x8x128xbf16, #tpu.memory_space<vmem>>, %arg4: memref<128x128xbf16, #tpu.memory_space<vmem>>, %arg5: memref<128x128xbf16, #tpu.memory_space<vmem>>, %arg6: memref<128x256xbf16, #tpu.memory_space<vmem>>, %arg7: memref<128x256xbf16, #tpu.memory_space<vmem>>, %arg8: memref<1x384xf32, #tpu.memory_space<vmem>>, %arg9: memref<1x3x256xbf16, #tpu.memory_space<vmem>>) attributes {dimension_semantics = [#tpu.dimension_semantics<parallel>], iteration_bounds = array<i64: 8>, scalar_prefetch = 1 : i64, scratch_operands = 0 : i64, tpu.core_type = #tpu.core_type<tc>, window_params = [{transform_indices = @transform_0, window_bounds = array<i64: 1, 8, 8>}, {transform_indices = @transform_1, window_bounds = array<i64: 1, 8, 128>}, {pipeline_mode = #tpu.pipeline_mode<synchronous>, transform_indices = @transform_2, window_bounds = array<i64: 128, 128>}, {pipeline_mode = #tpu.pipeline_mode<synchronous>, transform_indices = @transform_3, window_bounds = array<i64: 128, 128>}, {pipeline_mode = #tpu.pipeline_mode<synchronous>, transform_indices = @transform_4, window_bounds = array<i64: 128, 256>}, {pipeline_mode = #tpu.pipeline_mode<synchronous>, transform_indices = @transform_5, window_bounds = array<i64: 128, 256>}, {pipeline_mode = #tpu.pipeline_mode<synchronous>, transform_indices = @transform_6, window_bounds = array<i64: 1, 384>}, {transform_indices = @transform_7, window_bounds = array<i64: 1, 3, 256>}]} {
    %c0 = arith.constant 0 : index
    %c0_0 = arith.constant 0 : index
    %c0_1 = arith.constant 0 : index
    %0 = vector.load %arg2[%c0, %c0_0, %c0_1] : memref<1x8x8xbf16, #tpu.memory_space<vmem>>, vector<1x8x8xbf16>
    %1 = vector.shape_cast %0 : vector<1x8x8xbf16> to vector<8x8xbf16>
    %c0_2 = arith.constant 0 : index
    %c0_3 = arith.constant 0 : index
    %c0_4 = arith.constant 0 : index
    %2 = vector.load %arg3[%c0_2, %c0_3, %c0_4] : memref<1x8x128xbf16, #tpu.memory_space<vmem>>, vector<1x8x128xbf16>
    %3 = vector.shape_cast %2 : vector<1x8x128xbf16> to vector<8x128xbf16>
    %cst = arith.constant dense<0.000000e+00> : vector<8x128xf32>
    %4 = tpu.matmul %1, %3, %cst {dimension_numbers = #tpu.dot_dimension_numbers<[1], [0], [0], [1], [0, 0, 1, 1], [], []>} : vector<8x8xbf16>, vector<8x128xbf16>, vector<8x128xf32> -> vector<8x128xf32>
    %5 = arith.truncf %4 : vector<8x128xf32> to vector<8x128xbf16>
    %c0_5 = arith.constant 0 : index
    %c0_6 = arith.constant 0 : index
    %6 = vector.load %arg4[%c0_5, %c0_6] : memref<128x128xbf16, #tpu.memory_space<vmem>>, vector<128x128xbf16>
    %cst_7 = arith.constant dense<0.000000e+00> : vector<8x128xf32>
    %7 = tpu.matmul %5, %6, %cst_7 {dimension_numbers = #tpu.dot_dimension_numbers<[1], [0], [0], [1], [0, 0, 1, 1], [], []>} : vector<8x128xbf16>, vector<128x128xbf16>, vector<8x128xf32> -> vector<8x128xf32>
    %c0_8 = arith.constant 0 : index
    %c0_9 = arith.constant 0 : index
    %8 = vector.load %arg5[%c0_8, %c0_9] : memref<128x128xbf16, #tpu.memory_space<vmem>>, vector<128x128xbf16>
    %cst_10 = arith.constant dense<0.000000e+00> : vector<8x128xf32>
    %9 = tpu.matmul %3, %8, %cst_10 {dimension_numbers = #tpu.dot_dimension_numbers<[1], [0], [0], [1], [0, 0, 1, 1], [], []>} : vector<8x128xbf16>, vector<128x128xbf16>, vector<8x128xf32> -> vector<8x128xf32>
    %10 = arith.addf %7, %9 : vector<8x128xf32>
    %c0_11 = arith.constant 0 : index
    %c0_12 = arith.constant 0 : index
    %11 = vector.load %arg8[%c0_11, %c0_12] : memref<1x384xf32, #tpu.memory_space<vmem>>, vector<1x128xf32>
    %12 = vector.broadcast %11 : vector<1x128xf32> to vector<8x128xf32>
    %13 = arith.addf %10, %12 : vector<8x128xf32>
    %cst_13 = arith.constant 0.00999999977 : f32
    %14 = vector.broadcast %cst_13 : f32 to vector<8x128xf32>
    %15 = arith.mulf %14, %13 : vector<8x128xf32>
    %16 = arith.maximumf %13, %15 : vector<8x128xf32>
    %17 = arith.truncf %16 : vector<8x128xf32> to vector<8x128xbf16>
    %cst_14 = arith.constant dense<0.000000e+00> : vector<8x128xf32>
    %18 = tpu.matmul %1, %17, %cst_14 {dimension_numbers = #tpu.dot_dimension_numbers<[1], [0], [0], [1], [0, 0, 1, 1], [], []>} : vector<8x8xbf16>, vector<8x128xbf16>, vector<8x128xf32> -> vector<8x128xf32>
    %19 = arith.truncf %18 : vector<8x128xf32> to vector<8x128xbf16>
    %c0_15 = arith.constant 0 : index
    %c0_16 = arith.constant 0 : index
    %20 = vector.load %arg6[%c0_15, %c0_16] : memref<128x256xbf16, #tpu.memory_space<vmem>>, vector<128x256xbf16>
    %cst_17 = arith.constant dense<0.000000e+00> : vector<8x256xf32>
    %21 = tpu.matmul %19, %20, %cst_17 {dimension_numbers = #tpu.dot_dimension_numbers<[1], [0], [0], [1], [0, 0, 1, 1], [], []>} : vector<8x128xbf16>, vector<128x256xbf16>, vector<8x256xf32> -> vector<8x256xf32>
    %c0_18 = arith.constant 0 : index
    %c0_19 = arith.constant 0 : index
    %22 = vector.load %arg7[%c0_18, %c0_19] : memref<128x256xbf16, #tpu.memory_space<vmem>>, vector<128x256xbf16>
    %cst_20 = arith.constant dense<0.000000e+00> : vector<8x256xf32>
    %23 = tpu.matmul %17, %22, %cst_20 {dimension_numbers = #tpu.dot_dimension_numbers<[1], [0], [0], [1], [0, 0, 1, 1], [], []>} : vector<8x128xbf16>, vector<128x256xbf16>, vector<8x256xf32> -> vector<8x256xf32>
    %24 = arith.addf %21, %23 : vector<8x256xf32>
    %c0_21 = arith.constant 0 : index
    %c128 = arith.constant 128 : index
    %25 = vector.load %arg8[%c0_21, %c128] : memref<1x384xf32, #tpu.memory_space<vmem>>, vector<1x256xf32>
    %26 = vector.broadcast %25 : vector<1x256xf32> to vector<8x256xf32>
    %27 = arith.addf %24, %26 : vector<8x256xf32>
    %cst_22 = arith.constant 0.00999999977 : f32
    %28 = vector.broadcast %cst_22 : f32 to vector<8x256xf32>
    %29 = arith.mulf %28, %27 : vector<8x256xf32>
    %30 = arith.maximumf %27, %29 : vector<8x256xf32>
    %31 = arith.truncf %30 : vector<8x256xf32> to vector<8x256xbf16>
    %32 = arith.index_cast %arg0 : i32 to index
    %c0_23 = arith.constant 0 : index
    %33 = memref.load %arg1[%32, %c0_23] : memref<8x4xi32, #tpu.memory_space<smem>>
    %34 = arith.index_cast %arg0 : i32 to index
    %c1 = arith.constant 1 : index
    %35 = memref.load %arg1[%34, %c1] : memref<8x4xi32, #tpu.memory_space<smem>>
    %36 = arith.index_cast %arg0 : i32 to index
    %c2 = arith.constant 2 : index
    %37 = memref.load %arg1[%36, %c2] : memref<8x4xi32, #tpu.memory_space<smem>>
    %38 = tpu.iota {dimensions = array<i32: 0>} : vector<8x8xi32>
    %39 = tpu.iota {dimensions = array<i32: 1>} : vector<8x8xi32>
    %c0_i32 = arith.constant 0 : i32
    %40 = vector.broadcast %c0_i32 : i32 to vector<8x8xi32>
    %41 = arith.cmpi eq, %38, %40 : vector<8x8xi32>
    %42 = vector.broadcast %33 : i32 to vector<8x8xi32>
    %43 = arith.cmpi slt, %39, %42 : vector<8x8xi32>
    %44 = arith.andi %41, %43 : vector<8x8xi1>
    %c1_i32 = arith.constant 1 : i32
    %45 = vector.broadcast %c1_i32 : i32 to vector<8x8xi32>
    %46 = arith.cmpi eq, %38, %45 : vector<8x8xi32>
    %47 = vector.broadcast %35 : i32 to vector<8x8xi32>
    %48 = arith.cmpi eq, %39, %47 : vector<8x8xi32>
    %49 = arith.andi %46, %48 : vector<8x8xi1>
    %50 = arith.ori %44, %49 : vector<8x8xi1>
    %c2_i32 = arith.constant 2 : i32
    %51 = vector.broadcast %c2_i32 : i32 to vector<8x8xi32>
    %52 = arith.cmpi eq, %38, %51 : vector<8x8xi32>
    %53 = vector.broadcast %37 : i32 to vector<8x8xi32>
    %54 = arith.cmpi eq, %39, %53 : vector<8x8xi32>
    %55 = arith.andi %52, %54 : vector<8x8xi1>
    %56 = arith.ori %50, %55 : vector<8x8xi1>
    %57 = arith.extui %56 : vector<8x8xi1> to vector<8x8xi32>
    %58 = arith.sitofp %57 : vector<8x8xi32> to vector<8x8xf32>
    %59 = arith.truncf %58 : vector<8x8xf32> to vector<8x8xbf16>
    %cst_24 = arith.constant dense<0.000000e+00> : vector<8x256xf32>
    %60 = tpu.matmul %59, %31, %cst_24 {dimension_numbers = #tpu.dot_dimension_numbers<[1], [0], [0], [1], [0, 0, 1, 1], [], []>} : vector<8x8xbf16>, vector<8x256xbf16>, vector<8x256xf32> -> vector<8x256xf32>
    %61 = vector.extract_strided_slice %60 {offsets = [0, 0], sizes = [3, 256], strides = [1, 1]} : vector<8x256xf32> to vector<3x256xf32>
    %62 = arith.truncf %61 : vector<3x256xf32> to vector<3x256xbf16>
    %c0_25 = arith.constant 0 : index
    %c0_26 = arith.constant 0 : index
    %c0_27 = arith.constant 0 : index
    %63 = vector.load %arg9[%c0_25, %c0_26, %c0_27] : memref<1x3x256xbf16, #tpu.memory_space<vmem>>, vector<1x3x256xbf16>
    %64 = vector.shape_cast %63 : vector<1x3x256xbf16> to vector<3x256xbf16>
    %65 = vector.shape_cast %62 : vector<3x256xbf16> to vector<1x3x256xbf16>
    tpu.vector_store %arg9[%c0_25, %c0_26, %c0_27], %65 {strides = array<i32>} : memref<1x3x256xbf16, #tpu.memory_space<vmem>>, vector<1x3x256xbf16>,
    return
  }
  func.func @transform_0(%arg0: i32, %arg1: memref<8x4xi32, #tpu.memory_space<smem>>) -> (i32, i32, i32) {
    %c0_i32 = arith.constant 0 : i32
    %c0_i32_0 = arith.constant 0 : i32
    %c0_i32_1 = arith.constant 0 : i32
    return %arg0, %c0_i32, %c0_i32_0 : i32, i32, i32
  }
  func.func @transform_1(%arg0: i32, %arg1: memref<8x4xi32, #tpu.memory_space<smem>>) -> (i32, i32, i32) {
    %c0_i32 = arith.constant 0 : i32
    %c0_i32_0 = arith.constant 0 : i32
    %c0_i32_1 = arith.constant 0 : i32
    return %arg0, %c0_i32, %c0_i32_0 : i32, i32, i32
  }
  func.func @transform_2(%arg0: i32, %arg1: memref<8x4xi32, #tpu.memory_space<smem>>) -> (i32, i32) {
    %c0_i32 = arith.constant 0 : i32
    %c0_i32_0 = arith.constant 0 : i32
    %c0_i32_1 = arith.constant 0 : i32
    return %c0_i32, %c0_i32_0 : i32, i32
  }
  func.func @transform_3(%arg0: i32, %arg1: memref<8x4xi32, #tpu.memory_space<smem>>) -> (i32, i32) {
    %c0_i32 = arith.constant 0 : i32
    %c0_i32_0 = arith.constant 0 : i32
    %c0_i32_1 = arith.constant 0 : i32
    return %c0_i32, %c0_i32_0 : i32, i32
  }
  func.func @transform_4(%arg0: i32, %arg1: memref<8x4xi32, #tpu.memory_space<smem>>) -> (i32, i32) {
    %c0_i32 = arith.constant 0 : i32
    %c0_i32_0 = arith.constant 0 : i32
    %c0_i32_1 = arith.constant 0 : i32
    return %c0_i32, %c0_i32_0 : i32, i32
  }
  func.func @transform_5(%arg0: i32, %arg1: memref<8x4xi32, #tpu.memory_space<smem>>) -> (i32, i32) {
    %c0_i32 = arith.constant 0 : i32
    %c0_i32_0 = arith.constant 0 : i32
    %c0_i32_1 = arith.constant 0 : i32
    return %c0_i32, %c0_i32_0 : i32, i32
  }
  func.func @transform_6(%arg0: i32, %arg1: memref<8x4xi32, #tpu.memory_space<smem>>) -> (i32, i32) {
    %c0_i32 = arith.constant 0 : i32
    %c0_i32_0 = arith.constant 0 : i32
    %c0_i32_1 = arith.constant 0 : i32
    return %c0_i32, %c0_i32_0 : i32, i32
  }
  func.func @transform_7(%arg0: i32, %arg1: memref<8x4xi32, #tpu.memory_space<smem>>) -> (i32, i32, i32) {
    %c0_i32 = arith.constant 0 : i32
    %c0_i32_0 = arith.constant 0 : i32
    %c0_i32_1 = arith.constant 0 : i32
    return %arg0, %c0_i32, %c0_i32_0 : i32, i32, i32
  }
}

</mosaic_0001>

<llo_original>
// kernel: tpu_custom_call.1
$region0: #{tpu_custom_call.1}
  #allocation0 [shape = 'u32[]', space=smem, size = 0x4, offset = 0x4, fixed_abs, tag = 'smem constant byte address 0x4 - core index']
  #allocation1 [shape = 'u32[72,128]{1,0:T(1,128)}', space=vmem, size = 0x9000, scoped, tag = 'internal scratch']
  #allocation2 [shape = 's32[1]{0}', space=sflag, size = 0x4, scoped, tag = 'scoped memory for tpu_custom_call.1']
  #allocation3 [shape = 'u8[4096]{0}', space=smem, size = 0x1000, scoped, tag = 'prefetched SMEM operand 0']
  %s0 = inlined_call_operand.vmem [shape: s32[8,4], index: 0, kind: input, shape index: {}]
  %s1 = inlined_call_operand.hbm [shape: bf16[8,8,8], index: 1, kind: input, shape index: {}]
  %s2 = inlined_call_operand.hbm [shape: bf16[8,8,128], index: 2, kind: input, shape index: {}]
  %s3 = inlined_call_operand.hbm [shape: bf16[128,128], index: 3, kind: input, shape index: {}]
  %s4 = inlined_call_operand.hbm [shape: bf16[128,128], index: 4, kind: input, shape index: {}]
  %s5 = inlined_call_operand.hbm [shape: bf16[128,256], index: 5, kind: input, shape index: {}]
  %s6 = inlined_call_operand.hbm [shape: bf16[128,256], index: 6, kind: input, shape index: {}]
  %s7 = inlined_call_operand.vmem [shape: f32[1,384], index: 7, kind: input, shape index: {}]
  %s8 = inlined_call_operand.vmem [shape: bf16[8,3,256], index: 8, kind: output, shape index: {}]
  %s9 = sld [smem:[#allocation0]]
  $region85: #{tpu_custom_call.1} parent=0
    _
  %s11 = ssub.s32 1, %s9
  %s12 = scalar_select 0, %s11, %s9
  %s14 = sshll.u32 %s0, 4
  %s15 = int_to_ptr.vmem [resolvable:$true] %s14
  %17 = dma.vmem_to_smem %s15, 128, [#allocation3], [#allocation2]
  %19 = dma.done [#allocation2], 128
  %20 = sfence
  $region1: #{tpu_custom_call.1} parent=0
    #allocation4 [shape = 'u8[4096]{0}', space=vmem, size = 0x1000, scoped, tag = 'input window, operand 1']
    #allocation5 [shape = 's32[2]{0}', space=sflag, size = 0x8, scoped, tag = 'scoped memory for tpu_custom_call.1']
    #allocation6 [shape = 'u8[4096]{0}', space=vmem, size = 0x1000, scoped, tag = 'input window, operand 2']
    #allocation7 [shape = 's32[2]{0}', space=sflag, size = 0x8, scoped, tag = 'scoped memory for tpu_custom_call.1']
    #allocation8 [shape = 'u8[32768]{0}', space=vmem, size = 0x8000, scoped, tag = 'input window, operand 3, single buffered']
    #allocation9 [shape = 'u8[32768]{0}', space=vmem, size = 0x8000, scoped, tag = 'input window, operand 4, single buffered']
    #allocation10 [shape = 's32[1]{0}', space=sflag, size = 0x4, scoped, tag = 'scoped memory for tpu_custom_call.1']
    #allocation11 [shape = 'u8[65536]{0}', space=vmem, size = 0x10000, scoped, tag = 'input window, operand 5, single buffered']
    #allocation12 [shape = 'u8[65536]{0}', space=vmem, size = 0x10000, scoped, tag = 'input window, operand 6, single buffered']
    #allocation13 [shape = 's32[1]{0}', space=sflag, size = 0x4, scoped, tag = 'scoped memory for tpu_custom_call.1']
    %21 = vsyncpa [#allocation5], 0
    %s22 = scalar_lea.sflag [#allocation5], 1
    %23 = vsyncpa %s22, 0
    %24 = vsyncpa [#allocation7], 0
    %s25 = scalar_lea.sflag [#allocation7], 1
    %26 = vsyncpa %s25, 0
    %27 = vsyncpa [#allocation10], 0
    %28 = vsyncpa [#allocation13], 0
    loop: start=0, step=1, limit=10
    $region2: #{tpu_custom_call.1} parent=1 // loop_pre_header
      _
    $region3: #{tpu_custom_call.1} parent=1 // loop_header
      %s30 = sphi 0, %s34
      %p31 = scmp.ge.s32.totalorder %s30, 10
      %s40 = sphi 0, %s42
      %s43 = sphi 0, %s40
      %s44 = sphi 0, %s43
      %s60 = sphi 0, %s44
      %s66 = sphi 0, %s68
      %s69 = sphi 0, %s66
      %s70 = sphi 0, %s69
      %s86 = sphi 0, %s70
      %s90 = sphi 0, %s90
      %s92 = sphi 0, %s90
      %s93 = sphi 0, %s92
      %s107 = sphi 0, %s93
      %s111 = sphi 0, %s111
      %s113 = sphi 0, %s111
      %s114 = sphi 0, %s113
      %s128 = sphi 0, %s114
      %s132 = sphi 0, %s132
      %s134 = sphi 0, %s132
      %s135 = sphi 0, %s134
      %s149 = sphi 0, %s135
      %s153 = sphi 0, %s153
      %s155 = sphi 0, %s153
      %s156 = sphi 0, %s155
      %s170 = sphi 0, %s156
      %s174 = sphi 0, %s174
      %s176 = sphi 0, %s174
      %s177 = sphi 0, %s176
      %s191 = sphi 0, %s177
      %s197 = sphi 0, %s199
      %s200 = sphi 0, %s197
      %s201 = sphi 0, %s200
      %s217 = sphi 0, %s201
    $region4: #{tpu_custom_call.1} parent=1 // loop_header_branch
      %33 = sbr.rel (%p31) target = $region8
    $region5: #{tpu_custom_call.1} parent=1 // loop_body
      %s35 = ssub.s32 %s30, 1
      %s36 = ssub.s32 %s30, 2
      %s37 = sadd.s32 %s30, 1
      %s38 = ssub.s32 %s30, %s37
      %p39 = scmp.eq.s32.totalorder %s38, 0
      %s41 = sadd.s32 %s40, 1
      %s42 = scalar_select %p39, %s40, %s41
      %p45 = pneg %p39
      %p46 = scmp.eq.s32.totalorder %s30, 7
      %p47 = por %p45, %p46
      %p48 = scmp.ne.s32.totalorder %s40, %s43
      %p49 = scmp.eq.s32.totalorder %s30, 0
      %p50 = por %p48, %p49
      %p51 = scmp.ne.s32.totalorder %s40, %s43
      %p52 = scmp.eq.s32.totalorder %s35, 7
      %p53 = por %p51, %p52
      %p54 = scmp.ne.s32.totalorder %s43, %s44
      %p55 = scmp.eq.s32.totalorder %s35, 0
      %p56 = por %p54, %p55
      %p57 = scmp.ne.s32.totalorder %s43, %s44
      %p58 = scmp.eq.s32.totalorder %s36, 7
      %p59 = por %p57, %p58
      %p61 = scmp.ne.s32.totalorder %s44, %s60
      %p62 = scmp.eq.s32.totalorder %s36, 0
      %p63 = por %p61, %p62
      %s64 = ssub.s32 %s30, %s37
      %p65 = scmp.eq.s32.totalorder %s64, 0
      %s67 = sadd.s32 %s66, 1
      %s68 = scalar_select %p65, %s66, %s67
      %p71 = pneg %p65
      %p72 = scmp.eq.s32.totalorder %s30, 7
      %p73 = por %p71, %p72
      %p74 = scmp.ne.s32.totalorder %s66, %s69
      %p75 = scmp.eq.s32.totalorder %s30, 0
      %p76 = por %p74, %p75
      %p77 = scmp.ne.s32.totalorder %s66, %s69
      %p78 = scmp.eq.s32.totalorder %s35, 7
      %p79 = por %p77, %p78
      %p80 = scmp.ne.s32.totalorder %s69, %s70
      %p81 = scmp.eq.s32.totalorder %s35, 0
      %p82 = por %p80, %p81
      %p83 = scmp.ne.s32.totalorder %s69, %s70
      %p84 = scmp.eq.s32.totalorder %s36, 7
      %p85 = por %p83, %p84
      %p87 = scmp.ne.s32.totalorder %s70, %s86
      %p88 = scmp.eq.s32.totalorder %s36, 0
      %p89 = por %p87, %p88
      %s91 = sadd.s32 %s90, 1
      %p94 = scmp.eq.s32.totalorder %s30, 7
      %p95 = scmp.ne.s32.totalorder %s90, %s92
      %p96 = scmp.eq.s32.totalorder %s30, 0
      %p97 = por %p95, %p96
      %p98 = scmp.ne.s32.totalorder %s90, %s92
      %p99 = scmp.eq.s32.totalorder %s35, 7
      %p100 = por %p98, %p99
      %p101 = scmp.ne.s32.totalorder %s92, %s93
      %p102 = scmp.eq.s32.totalorder %s35, 0
      %p103 = por %p101, %p102
      %p104 = scmp.ne.s32.totalorder %s92, %s93
      %p105 = scmp.eq.s32.totalorder %s36, 7
      %p106 = por %p104, %p105
      %p108 = scmp.ne.s32.totalorder %s93, %s107
      %p109 = scmp.eq.s32.totalorder %s36, 0
      %p110 = por %p108, %p109
      %s112 = sadd.s32 %s111, 1
      %p115 = scmp.eq.s32.totalorder %s30, 7
      %p116 = scmp.ne.s32.totalorder %s111, %s113
      %p117 = scmp.eq.s32.totalorder %s30, 0
      %p118 = por %p116, %p117
      %p119 = scmp.ne.s32.totalorder %s111, %s113
      %p120 = scmp.eq.s32.totalorder %s35, 7
      %p121 = por %p119, %p120
      %p122 = scmp.ne.s32.totalorder %s113, %s114
      %p123 = scmp.eq.s32.totalorder %s35, 0
      %p124 = por %p122, %p123
      %p125 = scmp.ne.s32.totalorder %s113, %s114
      %p126 = scmp.eq.s32.totalorder %s36, 7
      %p127 = por %p125, %p126
      %p129 = scmp.ne.s32.totalorder %s114, %s128
      %p130 = scmp.eq.s32.totalorder %s36, 0
      %p131 = por %p129, %p130
      %s133 = sadd.s32 %s132, 1
      %p136 = scmp.eq.s32.totalorder %s30, 7
      %p137 = scmp.ne.s32.totalorder %s132, %s134
      %p138 = scmp.eq.s32.totalorder %s30, 0
      %p139 = por %p137, %p138
      %p140 = scmp.ne.s32.totalorder %s132, %s134
      %p141 = scmp.eq.s32.totalorder %s35, 7
      %p142 = por %p140, %p141
      %p143 = scmp.ne.s32.totalorder %s134, %s135
      %p144 = scmp.eq.s32.totalorder %s35, 0
      %p145 = por %p143, %p144
      %p146 = scmp.ne.s32.totalorder %s134, %s135
      %p147 = scmp.eq.s32.totalorder %s36, 7
      %p148 = por %p146, %p147
      %p150 = scmp.ne.s32.totalorder %s135, %s149
      %p151 = scmp.eq.s32.totalorder %s36, 0
      %p152 = por %p150, %p151
      %s154 = sadd.s32 %s153, 1
      %p157 = scmp.eq.s32.totalorder %s30, 7
      %p158 = scmp.ne.s32.totalorder %s153, %s155
      %p159 = scmp.eq.s32.totalorder %s30, 0
      %p160 = por %p158, %p159
      %p161 = scmp.ne.s32.totalorder %s153, %s155
      %p162 = scmp.eq.s32.totalorder %s35, 7
      %p163 = por %p161, %p162
      %p164 = scmp.ne.s32.totalorder %s155, %s156
      %p165 = scmp.eq.s32.totalorder %s35, 0
      %p166 = por %p164, %p165
      %p167 = scmp.ne.s32.totalorder %s155, %s156
      %p168 = scmp.eq.s32.totalorder %s36, 7
      %p169 = por %p167, %p168
      %p171 = scmp.ne.s32.totalorder %s156, %s170
      %p172 = scmp.eq.s32.totalorder %s36, 0
      %p173 = por %p171, %p172
      %s175 = sadd.s32 %s174, 1
      %p178 = scmp.eq.s32.totalorder %s30, 7
      %p179 = scmp.ne.s32.totalorder %s174, %s176
      %p180 = scmp.eq.s32.totalorder %s30, 0
      %p181 = por %p179, %p180
      %p182 = scmp.ne.s32.totalorder %s174, %s176
      %p183 = scmp.eq.s32.totalorder %s35, 7
      %p184 = por %p182, %p183
      %p185 = scmp.ne.s32.totalorder %s176, %s177
      %p186 = scmp.eq.s32.totalorder %s35, 0
      %p187 = por %p185, %p186
      %p188 = scmp.ne.s32.totalorder %s176, %s177
      %p189 = scmp.eq.s32.totalorder %s36, 7
      %p190 = por %p188, %p189
      %p192 = scmp.ne.s32.totalorder %s177, %s191
      %p193 = scmp.eq.s32.totalorder %s36, 0
      %p194 = por %p192, %p193
      %s195 = ssub.s32 %s30, %s37
      %p196 = scmp.eq.s32.totalorder %s195, 0
      %s198 = sadd.s32 %s197, 1
      %s199 = scalar_select %p196, %s197, %s198
      %p202 = pneg %p196
      %p203 = scmp.eq.s32.totalorder %s30, 7
      %p204 = por %p202, %p203
      %p205 = scmp.ne.s32.totalorder %s197, %s200
      %p206 = scmp.eq.s32.totalorder %s30, 0
      %p207 = por %p205, %p206
      %p208 = scmp.ne.s32.totalorder %s197, %s200
      %p209 = scmp.eq.s32.totalorder %s35, 7
      %p210 = por %p208, %p209
      %p211 = scmp.ne.s32.totalorder %s200, %s201
      %p212 = scmp.eq.s32.totalorder %s35, 0
      %p213 = por %p211, %p212
      %p214 = scmp.ne.s32.totalorder %s200, %s201
      %p215 = scmp.eq.s32.totalorder %s36, 7
      %p216 = por %p214, %p215
      %p218 = scmp.ne.s32.totalorder %s201, %s217
      %p219 = scmp.eq.s32.totalorder %s36, 0
      %p220 = por %p218, %p219
      %p221 = scmp.le.s32.totalorder 1, %s30
      %p222 = scmp.lt.s32.totalorder %s30, 9
      %p223 = pnand %p221, %p222
      %p224 = pneg %p223
      // Predicated region
      $region9: #{tpu_custom_call.1} parent=5 // pred_check
        _
      $region10: #{tpu_custom_call.1} parent=5 // pred_check_branch
        %226 = sbr.rel (%p223) target = $region12
      $region11: #{tpu_custom_call.1} parent=5 // pred_region
        %s227 = ssub.s32 %s30, 1
        // Predicated region
        $region13: #{tpu_custom_call.1} parent=11 // pred_check
          %p228 = pneg %p103
        $region14: #{tpu_custom_call.1} parent=11 // pred_check_branch
          %230 = sbr.rel (%p228) target = $region16
        $region15: #{tpu_custom_call.1} parent=11 // pred_region
          %232 = vsyncadd [#allocation7], 0
          %s233 = sshll.u32 %s3, 4
          %s234 = int_to_ptr.hbm [resolvable:$true] %s233
          %s235 = sshll.u32 [#allocation8], 4
          %s236 = int_to_ptr.vmem [resolvable:$true] %s235
          %241 = dma.hbm_to_vmem [thread:$0]  %s234, 1024, %s236, [#allocation7], 64, 64, 4
        $region16: #{tpu_custom_call.1} parent=11 // pred_fallthru
          _
        // Predicated region
        $region17: #{tpu_custom_call.1} parent=11 // pred_check
          %p242 = pneg %p124
        $region18: #{tpu_custom_call.1} parent=11 // pred_check_branch
          %244 = sbr.rel (%p242) target = $region20
        $region19: #{tpu_custom_call.1} parent=11 // pred_region
          %246 = vsyncadd [#allocation10], 0
          %s247 = sshll.u32 %s4, 4
          %s248 = int_to_ptr.hbm [resolvable:$true] %s247
          %s249 = sshll.u32 [#allocation9], 4
          %s250 = int_to_ptr.vmem [resolvable:$true] %s249
          %255 = dma.hbm_to_vmem [thread:$0]  %s248, 1024, %s250, [#allocation10], 64, 64, 4
        $region20: #{tpu_custom_call.1} parent=11 // pred_fallthru
          _
        // Predicated region
        $region21: #{tpu_custom_call.1} parent=11 // pred_check
          %p256 = pneg %p145
        $region22: #{tpu_custom_call.1} parent=11 // pred_check_branch
          %258 = sbr.rel (%p256) target = $region24
        $region23: #{tpu_custom_call.1} parent=11 // pred_region
          %260 = vsyncadd [#allocation10], 0
          %s261 = sshll.u32 %s5, 4
          %s262 = int_to_ptr.hbm [resolvable:$true] %s261
          %s263 = sshll.u32 [#allocation11], 4
          %s264 = int_to_ptr.vmem [resolvable:$true] %s263
          %269 = dma.hbm_to_vmem [thread:$0]  %s262, 2048, %s264, [#allocation10], 128, 128, 8
        $region24: #{tpu_custom_call.1} parent=11 // pred_fallthru
          _
        // Predicated region
        $region25: #{tpu_custom_call.1} parent=11 // pred_check
          %p270 = pneg %p166
        $region26: #{tpu_custom_call.1} parent=11 // pred_check_branch
          %272 = sbr.rel (%p270) target = $region28
        $region27: #{tpu_custom_call.1} parent=11 // pred_region
          %274 = vsyncadd [#allocation13], 0
          %s275 = sshll.u32 %s6, 4
          %s276 = int_to_ptr.hbm [resolvable:$true] %s275
          %s277 = sshll.u32 [#allocation12], 4
          %s278 = int_to_ptr.vmem [resolvable:$true] %s277
          %283 = dma.hbm_to_vmem [thread:$0]  %s276, 2048, %s278, [#allocation13], 128, 128, 8
        $region28: #{tpu_custom_call.1} parent=11 // pred_fallthru
          _
        // Predicated region
        $region29: #{tpu_custom_call.1} parent=11 // pred_check
          %p284 = pneg %p187
        $region30: #{tpu_custom_call.1} parent=11 // pred_check_branch
          %286 = sbr.rel (%p284) target = $region32
        $region31: #{tpu_custom_call.1} parent=11 // pred_region
          _
        $region32: #{tpu_custom_call.1} parent=11 // pred_fallthru
          _
      $region12: #{tpu_custom_call.1} parent=5 // pred_fallthru
        _
      %p287 = scmp.lt.s32.totalorder %s30, 8
      // Predicated region
      $region33: #{tpu_custom_call.1} parent=5 // pred_check
        %p288 = pneg %p287
      $region34: #{tpu_custom_call.1} parent=5 // pred_check_branch
        %290 = sbr.rel (%p288) target = $region36
      $region35: #{tpu_custom_call.1} parent=5 // pred_region
        // Predicated region
        $region37: #{tpu_custom_call.1} parent=35 // pred_check
          %p291 = pneg %p50
        $region38: #{tpu_custom_call.1} parent=35 // pred_check_branch
          %293 = sbr.rel (%p291) target = $region40
        $region39: #{tpu_custom_call.1} parent=35 // pred_region
          %s294 = sand.u32 %s40, 1
          %s295 = scalar_lea.sflag [#allocation5], %s294
          %s296 = sand.u32 %s40, 1
          %s297 = smul.addr %s296, 4
          %s298 = scalar_lea.vmem [#allocation4], %s297
          %300 = vsyncadd %s295, 0
          %s301 = smul.addr %s30, 4
          %s302 = scalar_lea.hbm %s1, %s301
          %s304 = sshll.u32 %s302, 4
          %s305 = int_to_ptr.hbm [resolvable:$true] %s304
          %s306 = sshll.u32 %s298, 4
          %s307 = int_to_ptr.vmem [resolvable:$true] %s306
          %309 = dma.hbm_to_vmem [thread:$0]  %s305, 64, %s307, %s295
        $region40: #{tpu_custom_call.1} parent=35 // pred_fallthru
          _
        // Predicated region
        $region41: #{tpu_custom_call.1} parent=35 // pred_check
          %p310 = pneg %p76
        $region42: #{tpu_custom_call.1} parent=35 // pred_check_branch
          %312 = sbr.rel (%p310) target = $region44
        $region43: #{tpu_custom_call.1} parent=35 // pred_region
          %s313 = sand.u32 %s30, 1
          %s314 = scalar_lea.sflag [#allocation7], %s313
          %s315 = sand.u32 %s66, 1
          %s316 = smul.addr %s315, 4
          %s317 = scalar_lea.vmem [#allocation6], %s316
          %319 = vsyncadd %s314, 0
          %s320 = smul.addr %s30, 4
          %s321 = scalar_lea.hbm %s2, %s320
          %s323 = sshll.u32 %s321, 4
          %s324 = int_to_ptr.hbm [resolvable:$true] %s323
          %s325 = sshll.u32 %s317, 4
          %s326 = int_to_ptr.vmem [resolvable:$true] %s325
          %328 = dma.hbm_to_vmem [thread:$0]  %s324, 64, %s326, %s314
        $region44: #{tpu_custom_call.1} parent=35 // pred_fallthru
          _
      $region36: #{tpu_custom_call.1} parent=5 // pred_fallthru
        _
      %p329 = scmp.le.s32.totalorder 1, %s30
      %p330 = scmp.lt.s32.totalorder %s30, 9
      %p331 = pnand %p329, %p330
      %p332 = pneg %p331
      // Predicated region
      $region45: #{tpu_custom_call.1} parent=5 // pred_check
        _
      $region46: #{tpu_custom_call.1} parent=5 // pred_check_branch
        %334 = sbr.rel (%p331) target = $region48
      $region47: #{tpu_custom_call.1} parent=5 // pred_region
        %s335 = ssub.s32 %s30, 1
        %s336 = sand.u32 %s43, 1
        %s337 = scalar_lea.sflag [#allocation5], %s336
        %s338 = sand.u32 %s43, 1
        %s339 = smul.addr %s338, 4
        %s340 = scalar_lea.vmem [#allocation4], %s339
        // Predicated region
        $region49: #{tpu_custom_call.1} parent=47 // pred_check
          %p341 = pneg %p56
        $region50: #{tpu_custom_call.1} parent=47 // pred_check_branch
          %343 = sbr.rel (%p341) target = $region52
        $region51: #{tpu_custom_call.1} parent=47 // pred_region
          %345 = dma.done %s337, 64
        $region52: #{tpu_custom_call.1} parent=47 // pred_fallthru
          _
        %s346 = sand.u32 %s35, 1
        %s347 = scalar_lea.sflag [#allocation7], %s346
        %s348 = sand.u32 %s69, 1
        %s349 = smul.addr %s348, 4
        %s350 = scalar_lea.vmem [#allocation6], %s349
        // Predicated region
        $region53: #{tpu_custom_call.1} parent=47 // pred_check
          %p351 = pneg %p82
        $region54: #{tpu_custom_call.1} parent=47 // pred_check_branch
          %353 = sbr.rel (%p351) target = $region56
        $region55: #{tpu_custom_call.1} parent=47 // pred_region
          %355 = dma.done %s347, 64
        $region56: #{tpu_custom_call.1} parent=47 // pred_fallthru
          _
        // Predicated region
        $region57: #{tpu_custom_call.1} parent=47 // pred_check
          %p356 = pneg %p103
        $region58: #{tpu_custom_call.1} parent=47 // pred_check_branch
          %358 = sbr.rel (%p356) target = $region60
        $region59: #{tpu_custom_call.1} parent=47 // pred_region
          %360 = dma.done [#allocation7], 1024
        $region60: #{tpu_custom_call.1} parent=47 // pred_fallthru
          _
        // Predicated region
        $region61: #{tpu_custom_call.1} parent=47 // pred_check
          %p361 = pneg %p124
        $region62: #{tpu_custom_call.1} parent=47 // pred_check_branch
          %363 = sbr.rel (%p361) target = $region64
        $region63: #{tpu_custom_call.1} parent=47 // pred_region
          %365 = dma.done [#allocation10], 1024
        $region64: #{tpu_custom_call.1} parent=47 // pred_fallthru
          _
        // Predicated region
        $region65: #{tpu_custom_call.1} parent=47 // pred_check
          %p366 = pneg %p145
        $region66: #{tpu_custom_call.1} parent=47 // pred_check_branch
          %368 = sbr.rel (%p366) target = $region68
        $region67: #{tpu_custom_call.1} parent=47 // pred_region
          %370 = dma.done [#allocation10], 2048
        $region68: #{tpu_custom_call.1} parent=47 // pred_fallthru
          _
        // Predicated region
        $region69: #{tpu_custom_call.1} parent=47 // pred_check
          %p371 = pneg %p166
        $region70: #{tpu_custom_call.1} parent=47 // pred_check_branch
          %373 = sbr.rel (%p371) target = $region72
        $region71: #{tpu_custom_call.1} parent=47 // pred_region
          %375 = dma.done [#allocation13], 2048
        $region72: #{tpu_custom_call.1} parent=47 // pred_fallthru
          _
        %s376 = sand.u32 %s43, 1
        %s377 = scalar_lea.sflag [#allocation5], %s376
        %s378 = sand.u32 %s43, 1
        %s379 = smul.addr %s378, 4
        %s380 = scalar_lea.vmem [#allocation4], %s379
        %p381 = pneg %p56
        %p382 = pneg %p53
        %s383 = sand.u32 %s35, 1
        %s384 = scalar_lea.sflag [#allocation7], %s383
        %s385 = sand.u32 %s69, 1
        %s386 = smul.addr %s385, 4
        %s387 = scalar_lea.vmem [#allocation6], %s386
        %p388 = pneg %p82
        %p389 = pneg %p79
        %p390 = pneg %p103
        %p391 = pneg %p100
        %p392 = pneg %p124
        %p393 = pneg %p121
        %p394 = pneg %p145
        %p395 = pneg %p142
        %p396 = pneg %p166
        %p397 = pneg %p163
        %p398 = pneg %p187
        %p399 = pneg %p184
        %p400 = pneg %p213
        %p401 = pneg %p210
        %p402 = scmp.lt.s32.totalorder %s35, 7
        %s403 = scalar_select %p402, %s35, 7
        %s404 = smul.addr %s403, 2
        %s405 = smul.addr %s404, 2
        %s406 = scalar_lea.vmem %s8, %s405
        %p407 = scmp.lt.s32.totalorder %s35, 7
        %s408 = scalar_select %p407, %s35, 7
        %s409 = smul.addr %s408, 2
        %s410 = smul.addr %s409, 2
        %s411 = scalar_lea.vmem %s8, %s410
        %v413 = vld [vmem:[%s340] sm:$0xf]
        %v414 = vld [vmem:[%s350] sm:$0xf]
        %vm415 = vcmask 64512
        %v417 = vsel %vm415, %v413, 0
        %vm419 = vcmask 1043456
        %v421 = vsel %vm419, %v414, 0
        %423 = vmatpush.bf16.msra.mxu0 0
        %424 = vmatpush.bf16.msra.mxu0 0
        %425 = vmatpush.bf16.msra.mxu0 0
        %426 = vmatpush.bf16.msra.mxu0 0
        %427 = vmatpush.bf16.msra.mxu0 0
        %428 = vmatpush.bf16.msra.mxu0 0
        %429 = vmatpush.bf16.msra.mxu0 0
        %430 = vmatpush.bf16.msra.mxu0 %v421
        %431 = vmatmul.bf16.gmra.mxu0 %v417
        %v432 = vpop.f32.mrf.mxu0
        %v433 = vadd.f32 0.0, %v432
        %v434 = vpop.f32.mrf.mxu0
        %435 = vdwg.mxu0
        %v436 = vpack.c.bf16 %v433, %v433
        %v437 = vld [vmem:[#allocation8] sm:$0xf]
        %v438 = vld [vmem:[#allocation8 + $0x4] sm:$0xf]
        %v439 = vld [vmem:[#allocation8 + $0x8] sm:$0xf]
        %v440 = vld [vmem:[#allocation8 + $0xc] sm:$0xf]
        %v441 = vld [vmem:[#allocation8 + $0x10] sm:$0xf]
        %v442 = vld [vmem:[#allocation8 + $0x14] sm:$0xf]
        %v443 = vld [vmem:[#allocation8 + $0x18] sm:$0xf]
        %v444 = vld [vmem:[#allocation8 + $0x1c] sm:$0xf]
        %v445 = vld [vmem:[#allocation8 + $0x20] sm:$0xf]
        %v446 = vld [vmem:[#allocation8 + $0x24] sm:$0xf]
        %v447 = vld [vmem:[#allocation8 + $0x28] sm:$0xf]
        %v448 = vld [vmem:[#allocation8 + $0x2c] sm:$0xf]
        %v449 = vld [vmem:[#allocation8 + $0x30] sm:$0xf]
        %v450 = vld [vmem:[#allocation8 + $0x34] sm:$0xf]
        %v451 = vld [vmem:[#allocation8 + $0x38] sm:$0xf]
        %v452 = vld [vmem:[#allocation8 + $0x3c] sm:$0xf]
        %v453 = vld [vmem:[#allocation9] sm:$0xf]
        %v454 = vld [vmem:[#allocation9 + $0x4] sm:$0xf]
        %v455 = vld [vmem:[#allocation9 + $0x8] sm:$0xf]
        %v456 = vld [vmem:[#allocation9 + $0xc] sm:$0xf]
        %v457 = vld [vmem:[#allocation9 + $0x10] sm:$0xf]
        %v458 = vld [vmem:[#allocation9 + $0x14] sm:$0xf]
        %v459 = vld [vmem:[#allocation9 + $0x18] sm:$0xf]
        %v460 = vld [vmem:[#allocation9 + $0x1c] sm:$0xf]
        %v461 = vld [vmem:[#allocation9 + $0x20] sm:$0xf]
        %v462 = vld [vmem:[#allocation9 + $0x24] sm:$0xf]
        %v463 = vld [vmem:[#allocation9 + $0x28] sm:$0xf]
        %v464 = vld [vmem:[#allocation9 + $0x2c] sm:$0xf]
        %v465 = vld [vmem:[#allocation9 + $0x30] sm:$0xf]
        %v466 = vld [vmem:[#allocation9 + $0x34] sm:$0xf]
        %v467 = vld [vmem:[#allocation9 + $0x38] sm:$0xf]
        %v468 = vld [vmem:[#allocation9 + $0x3c] sm:$0xf]
        %v485 = vunpack.c.l.b16 %v453
        %v486 = vunpack.c.l.b16 %v454
        %v487 = vunpack.c.l.b16 %v455
        %v488 = vunpack.c.l.b16 %v456
        %v489 = vunpack.c.l.b16 %v457
        %v490 = vunpack.c.l.b16 %v458
        %v491 = vunpack.c.l.b16 %v459
        %v492 = vunpack.c.l.b16 %v460
        %v493 = vunpack.c.l.b16 %v461
        %v494 = vunpack.c.l.b16 %v462
        %v495 = vunpack.c.l.b16 %v463
        %v496 = vunpack.c.l.b16 %v464
        %v497 = vunpack.c.l.b16 %v465
        %v498 = vunpack.c.l.b16 %v466
        %v499 = vunpack.c.l.b16 %v467
        %v500 = vunpack.c.l.b16 %v468
        %v501 = vpack.c.b16 %v486, %v485
        %v502 = vpack.c.b16 %v488, %v487
        %v503 = vpack.c.b16 %v490, %v489
        %v504 = vpack.c.b16 %v492, %v491
        %v505 = vpack.c.b16 %v494, %v493
        %v506 = vpack.c.b16 %v496, %v495
        %v507 = vpack.c.b16 %v498, %v497
        %v508 = vpack.c.b16 %v500, %v499
        %517 = vmatpush.bf16.msra.mxu0 %v508
        %518 = vmatpush.bf16.msra.mxu0 %v507
        %519 = vmatpush.bf16.msra.mxu0 %v506
        %520 = vmatpush.bf16.msra.mxu0 %v505
        %521 = vmatpush.bf16.msra.mxu0 %v504
        %522 = vmatpush.bf16.msra.mxu0 %v503
        %523 = vmatpush.bf16.msra.mxu0 %v502
        %524 = vmatpush.bf16.msra.mxu0 %v501
        %525 = vmatmul.bf16.gmra.mxu0 %v414
        %v526 = vpop.f32.mrf.mxu0
        %v527 = vadd.f32 0.0, %v526
        %v528 = vpop.f32.mrf.mxu0
        %529 = vdwg.mxu0
        %v546 = vunpack.c.l.b16 %v437
        %v547 = vunpack.c.l.b16 %v438
        %v548 = vunpack.c.l.b16 %v439
        %v549 = vunpack.c.l.b16 %v440
        %v550 = vunpack.c.l.b16 %v441
        %v551 = vunpack.c.l.b16 %v442
        %v552 = vunpack.c.l.b16 %v443
        %v553 = vunpack.c.l.b16 %v444
        %v554 = vunpack.c.l.b16 %v445
        %v555 = vunpack.c.l.b16 %v446
        %v556 = vunpack.c.l.b16 %v447
        %v557 = vunpack.c.l.b16 %v448
        %v558 = vunpack.c.l.b16 %v449
        %v559 = vunpack.c.l.b16 %v450
        %v560 = vunpack.c.l.b16 %v451
        %v561 = vunpack.c.l.b16 %v452
        %v562 = vpack.c.b16 %v547, %v546
        %v563 = vpack.c.b16 %v549, %v548
        %v564 = vpack.c.b16 %v551, %v550
        %v565 = vpack.c.b16 %v553, %v552
        %v566 = vpack.c.b16 %v555, %v554
        %v567 = vpack.c.b16 %v557, %v556
        %v568 = vpack.c.b16 %v559, %v558
        %v569 = vpack.c.b16 %v561, %v560
        %578 = vmatpush.bf16.msra.mxu0 %v569
        %579 = vmatpush.bf16.msra.mxu0 %v568
        %580 = vmatpush.bf16.msra.mxu0 %v567
        %581 = vmatpush.bf16.msra.mxu0 %v566
        %582 = vmatpush.bf16.msra.mxu0 %v565
        %583 = vmatpush.bf16.msra.mxu0 %v564
        %584 = vmatpush.bf16.msra.mxu0 %v563
        %585 = vmatpush.bf16.msra.mxu0 %v562
        %586 = vmatmul.bf16.gmra.mxu0 %v436
        %v587 = vpop.f32.mrf.mxu0
        %v588 = vadd.f32 %v527, %v587
        %v589 = vpop.f32.mrf.mxu0
        %590 = vdwg.mxu0
        %v591 = vld [vmem:[%s7] sm:$0x1]
        %v593 = vperm.slane %v591, 0
        %v595 = vadd.f32 %v588, %v593
        %v596 = vmul.f32 %v595, 0.01
        %v597 = vmax.f32 %v595, %v596
        %v598 = vpack.c.bf16 %v597, %v597
        %v600 = vsel %vm419, %v598, 0
        %602 = vmatpush.bf16.msra.mxu0 0
        %603 = vmatpush.bf16.msra.mxu0 0
        %604 = vmatpush.bf16.msra.mxu0 0
        %605 = vmatpush.bf16.msra.mxu0 0
        %606 = vmatpush.bf16.msra.mxu0 0
        %607 = vmatpush.bf16.msra.mxu0 0
        %608 = vmatpush.bf16.msra.mxu0 0
        %609 = vmatpush.bf16.msra.mxu0 %v600
        %610 = vmatmul.bf16.gmra.mxu0 %v417
        %v611 = vpop.f32.mrf.mxu0
        %v612 = vadd.f32 0.0, %v611
        %v613 = vpop.f32.mrf.mxu0
        %614 = vdwg.mxu0
        %v615 = vpack.c.bf16 %v612, %v612
        %v616 = vld [vmem:[#allocation11] sm:$0xff]
        %v617 = vld [vmem:[#allocation11 + $0x8] sm:$0xff]
        %v618 = vld [vmem:[#allocation11 + $0x10] sm:$0xff]
        %v619 = vld [vmem:[#allocation11 + $0x18] sm:$0xff]
        %v620 = vld [vmem:[#allocation11 + $0x20] sm:$0xff]
        %v621 = vld [vmem:[#allocation11 + $0x28] sm:$0xff]
        %v622 = vld [vmem:[#allocation11 + $0x30] sm:$0xff]
        %v623 = vld [vmem:[#allocation11 + $0x38] sm:$0xff]
        %v624 = vld [vmem:[#allocation11 + $0x40] sm:$0xff]
        %v625 = vld [vmem:[#allocation11 + $0x48] sm:$0xff]
        %v626 = vld [vmem:[#allocation11 + $0x50] sm:$0xff]
        %v627 = vld [vmem:[#allocation11 + $0x58] sm:$0xff]
        %v628 = vld [vmem:[#allocation11 + $0x60] sm:$0xff]
        %v629 = vld [vmem:[#allocation11 + $0x68] sm:$0xff]
        %v630 = vld [vmem:[#allocation11 + $0x70] sm:$0xff]
        %v631 = vld [vmem:[#allocation11 + $0x78] sm:$0xff]
        %v632 = vld [vmem:[#allocation12] sm:$0xff]
        %v633 = vld [vmem:[#allocation12 + $0x8] sm:$0xff]
        %v634 = vld [vmem:[#allocation12 + $0x10] sm:$0xff]
        %v635 = vld [vmem:[#allocation12 + $0x18] sm:$0xff]
        %v636 = vld [vmem:[#allocation12 + $0x20] sm:$0xff]
        %v637 = vld [vmem:[#allocation12 + $0x28] sm:$0xff]
        %v638 = vld [vmem:[#allocation12 + $0x30] sm:$0xff]
        %v639 = vld [vmem:[#allocation12 + $0x38] sm:$0xff]
        %v640 = vld [vmem:[#allocation12 + $0x40] sm:$0xff]
        %v641 = vld [vmem:[#allocation12 + $0x48] sm:$0xff]
        %v642 = vld [vmem:[#allocation12 + $0x50] sm:$0xff]
        %v643 = vld [vmem:[#allocation12 + $0x58] sm:$0xff]
        %v644 = vld [vmem:[#allocation12 + $0x60] sm:$0xff]
        %v645 = vld [vmem:[#allocation12 + $0x68] sm:$0xff]
        %v646 = vld [vmem:[#allocation12 + $0x70] sm:$0xff]
        %v647 = vld [vmem:[#allocation12 + $0x78] sm:$0xff]
        %v664 = vunpack.c.l.b16 %v632
        %v665 = vunpack.c.h.b16 %v632
        %v666 = vunpack.c.l.b16 %v633
        %v667 = vunpack.c.h.b16 %v633
        %v668 = vunpack.c.l.b16 %v634
        %v669 = vunpack.c.h.b16 %v634
        %v670 = vunpack.c.l.b16 %v635
        %v671 = vunpack.c.h.b16 %v635
        %v672 = vunpack.c.l.b16 %v636
        %v673 = vunpack.c.h.b16 %v636
        %v674 = vunpack.c.l.b16 %v637
        %v675 = vunpack.c.h.b16 %v637
        %v676 = vunpack.c.l.b16 %v638
        %v677 = vunpack.c.h.b16 %v638
        %v678 = vunpack.c.l.b16 %v639
        %v679 = vunpack.c.h.b16 %v639
        %v680 = vunpack.c.l.b16 %v640
        %v681 = vunpack.c.h.b16 %v640
        %v682 = vunpack.c.l.b16 %v641
        %v683 = vunpack.c.h.b16 %v641
        %v684 = vunpack.c.l.b16 %v642
        %v685 = vunpack.c.h.b16 %v642
        %v686 = vunpack.c.l.b16 %v643
        %v687 = vunpack.c.h.b16 %v643
        %v688 = vunpack.c.l.b16 %v644
        %v689 = vunpack.c.h.b16 %v644
        %v690 = vunpack.c.l.b16 %v645
        %v691 = vunpack.c.h.b16 %v645
        %v692 = vunpack.c.l.b16 %v646
        %v693 = vunpack.c.h.b16 %v646
        %v694 = vunpack.c.l.b16 %v647
        %v695 = vunpack.c.h.b16 %v647
        %v696 = vpack.c.b16 %v666, %v664
        %v697 = vpack.c.b16 %v667, %v665
        %v698 = vpack.c.b16 %v670, %v668
        %v699 = vpack.c.b16 %v671, %v669
        %v700 = vpack.c.b16 %v674, %v672
        %v701 = vpack.c.b16 %v675, %v673
        %v702 = vpack.c.b16 %v678, %v676
        %v703 = vpack.c.b16 %v679, %v677
        %v704 = vpack.c.b16 %v682, %v680
        %v705 = vpack.c.b16 %v683, %v681
        %v706 = vpack.c.b16 %v686, %v684
        %v707 = vpack.c.b16 %v687, %v685
        %v708 = vpack.c.b16 %v690, %v688
        %v709 = vpack.c.b16 %v691, %v689
        %v710 = vpack.c.b16 %v694, %v692
        %v711 = vpack.c.b16 %v695, %v693
        %728 = vmatpush.bf16.msra.mxu0 %v710
        %729 = vmatpush.bf16.msra.mxu0 %v708
        %730 = vmatpush.bf16.msra.mxu0 %v706
        %731 = vmatpush.bf16.msra.mxu0 %v704
        %732 = vmatpush.bf16.msra.mxu0 %v702
        %733 = vmatpush.bf16.msra.mxu0 %v700
        %734 = vmatpush.bf16.msra.mxu0 %v698
        %735 = vmatpush.bf16.msra.mxu0 %v696
        %736 = vmatmul.bf16.gmra.mxu0 %v598
        %v737 = vpop.f32.mrf.mxu0
        %v738 = vadd.f32 0.0, %v737
        %v739 = vpop.f32.mrf.mxu0
        %740 = vdwg.mxu0
        %741 = vmatpush.bf16.msra.mxu0 %v711
        %742 = vmatpush.bf16.msra.mxu0 %v709
        %743 = vmatpush.bf16.msra.mxu0 %v707
        %744 = vmatpush.bf16.msra.mxu0 %v705
        %745 = vmatpush.bf16.msra.mxu0 %v703
        %746 = vmatpush.bf16.msra.mxu0 %v701
        %747 = vmatpush.bf16.msra.mxu0 %v699
        %748 = vmatpush.bf16.msra.mxu0 %v697
        %749 = vmatmul.bf16.gmra.mxu0 %v598
        %v750 = vpop.f32.mrf.mxu0
        %v751 = vadd.f32 0.0, %v750
        %v752 = vpop.f32.mrf.mxu0
        %753 = vdwg.mxu0
        %v770 = vunpack.c.l.b16 %v616
        %v771 = vunpack.c.h.b16 %v616
        %v772 = vunpack.c.l.b16 %v617
        %v773 = vunpack.c.h.b16 %v617
        %v774 = vunpack.c.l.b16 %v618
        %v775 = vunpack.c.h.b16 %v618
        %v776 = vunpack.c.l.b16 %v619
        %v777 = vunpack.c.h.b16 %v619
        %v778 = vunpack.c.l.b16 %v620
        %v779 = vunpack.c.h.b16 %v620
        %v780 = vunpack.c.l.b16 %v621
        %v781 = vunpack.c.h.b16 %v621
        %v782 = vunpack.c.l.b16 %v622
        %v783 = vunpack.c.h.b16 %v622
        %v784 = vunpack.c.l.b16 %v623
        %v785 = vunpack.c.h.b16 %v623
        %v786 = vunpack.c.l.b16 %v624
        %v787 = vunpack.c.h.b16 %v624
        %v788 = vunpack.c.l.b16 %v625
        %v789 = vunpack.c.h.b16 %v625
        %v790 = vunpack.c.l.b16 %v626
        %v791 = vunpack.c.h.b16 %v626
        %v792 = vunpack.c.l.b16 %v627
        %v793 = vunpack.c.h.b16 %v627
        %v794 = vunpack.c.l.b16 %v628
        %v795 = vunpack.c.h.b16 %v628
        %v796 = vunpack.c.l.b16 %v629
        %v797 = vunpack.c.h.b16 %v629
        %v798 = vunpack.c.l.b16 %v630
        %v799 = vunpack.c.h.b16 %v630
        %v800 = vunpack.c.l.b16 %v631
        %v801 = vunpack.c.h.b16 %v631
        %v802 = vpack.c.b16 %v772, %v770
        %v803 = vpack.c.b16 %v773, %v771
        %v804 = vpack.c.b16 %v776, %v774
        %v805 = vpack.c.b16 %v777, %v775
        %v806 = vpack.c.b16 %v780, %v778
        %v807 = vpack.c.b16 %v781, %v779
        %v808 = vpack.c.b16 %v784, %v782
        %v809 = vpack.c.b16 %v785, %v783
        %v810 = vpack.c.b16 %v788, %v786
        %v811 = vpack.c.b16 %v789, %v787
        %v812 = vpack.c.b16 %v792, %v790
        %v813 = vpack.c.b16 %v793, %v791
        %v814 = vpack.c.b16 %v796, %v794
        %v815 = vpack.c.b16 %v797, %v795
        %v816 = vpack.c.b16 %v800, %v798
        %v817 = vpack.c.b16 %v801, %v799
        %834 = vmatpush.bf16.msra.mxu0 %v816
        %835 = vmatpush.bf16.msra.mxu0 %v814
        %836 = vmatpush.bf16.msra.mxu0 %v812
        %837 = vmatpush.bf16.msra.mxu0 %v810
        %838 = vmatpush.bf16.msra.mxu0 %v808
        %839 = vmatpush.bf16.msra.mxu0 %v806
        %840 = vmatpush.bf16.msra.mxu0 %v804
        %841 = vmatpush.bf16.msra.mxu0 %v802
        %842 = vmatmul.bf16.gmra.mxu0 %v615
        %v843 = vpop.f32.mrf.mxu0
        %v844 = vadd.f32 %v738, %v843
        %v845 = vpop.f32.mrf.mxu0
        %846 = vdwg.mxu0
        %847 = vmatpush.bf16.msra.mxu0 %v817
        %848 = vmatpush.bf16.msra.mxu0 %v815
        %849 = vmatpush.bf16.msra.mxu0 %v813
        %850 = vmatpush.bf16.msra.mxu0 %v811
        %851 = vmatpush.bf16.msra.mxu0 %v809
        %852 = vmatpush.bf16.msra.mxu0 %v807
        %853 = vmatpush.bf16.msra.mxu0 %v805
        %854 = vmatpush.bf16.msra.mxu0 %v803
        %855 = vmatmul.bf16.gmra.mxu0 %v615
        %v856 = vpop.f32.mrf.mxu0
        %v857 = vadd.f32 %v751, %v856
        %v858 = vpop.f32.mrf.mxu0
        %859 = vdwg.mxu0
        %v860 = vld [vmem:[%s7 + $0x1] sm:$0x3]
        %v862 = vperm.slane %v860, 0
        %v863 = vperm.slane %v860, 1
        %v866 = vadd.f32 %v844, %v862
        %v867 = vadd.f32 %v857, %v863
        %v868 = vmul.f32 %v866, 0.01
        %v869 = vmul.f32 %v867, 0.01
        %v870 = vmax.f32 %v866, %v868
        %v871 = vmax.f32 %v867, %v869
        %v872 = vpack.c.bf16 %v870, %v870
        %v873 = vpack.c.bf16 %v871, %v871
        %s874 = smul.u32 %s35, 128
        %s875 = sld [smem:[#allocation3 + %s874]]
        %s876 = sadd.s32 %s874, 1
        %s877 = sld [smem:[#allocation3 + %s876]]
        %s878 = sadd.s32 %s874, 2
        %s879 = sld [smem:[#allocation3 + %s878]]
        %v880 = vlaneseq
        %v881 = vshrl.u32 %v880, 7
        %v882 = vlaneseq
        %v883 = vand.u32 %v882, 127
        %vm884 = vcmp.eq.s32.totalorder %v881, 0
        %v885 = vstv %s875
        %vm886 = vcmp.lt.s32.totalorder %v883, %v885
        %vm887 = vmand %vm884, %vm886
        %vm888 = vcmp.eq.s32.totalorder %v881, 1
        %v889 = vstv %s877
        %vm890 = vcmp.eq.s32.totalorder %v883, %v889
        %vm891 = vmand %vm888, %vm890
        %vm892 = vmor %vm887, %vm891
        %vm893 = vcmp.eq.s32.totalorder %v881, 2
        %v894 = vstv %s879
        %vm895 = vcmp.eq.s32.totalorder %v883, %v894
        %vm896 = vmand %vm893, %vm895
        %vm897 = vmor %vm892, %vm896
        %v898 = vsel %vm897, 1, 0
        %v899 = vcvt.s32.f32 %v898
        %v900 = vpack.c.bf16 %v899, %v899
        %v902 = vsel %vm415, %v900, 0
        %v905 = vsel %vm419, %v872, 0
        %v908 = vsel %vm419, %v873, 0
        %910 = vmatpush.bf16.msra.mxu0 0
        %911 = vmatpush.bf16.msra.mxu0 0
        %912 = vmatpush.bf16.msra.mxu0 0
        %913 = vmatpush.bf16.msra.mxu0 0
        %914 = vmatpush.bf16.msra.mxu0 0
        %915 = vmatpush.bf16.msra.mxu0 0
        %916 = vmatpush.bf16.msra.mxu0 0
        %917 = vmatpush.bf16.msra.mxu0 %v905
        %918 = vmatmul.bf16.gmra.mxu0 %v902
        %v919 = vpop.f32.mrf.mxu0
        %v920 = vadd.f32 0.0, %v919
        %v921 = vpop.f32.mrf.mxu0
        %922 = vdwg.mxu0
        %923 = vmatpush.bf16.msra.mxu0 0
        %924 = vmatpush.bf16.msra.mxu0 0
        %925 = vmatpush.bf16.msra.mxu0 0
        %926 = vmatpush.bf16.msra.mxu0 0
        %927 = vmatpush.bf16.msra.mxu0 0
        %928 = vmatpush.bf16.msra.mxu0 0
        %929 = vmatpush.bf16.msra.mxu0 0
        %930 = vmatpush.bf16.msra.mxu0 %v908
        %931 = vmatmul.bf16.gmra.mxu0 %v902
        %v932 = vpop.f32.mrf.mxu0
        %v933 = vadd.f32 0.0, %v932
        %v934 = vpop.f32.mrf.mxu0
        %935 = vdwg.mxu0
        %v936 = vpack.c.bf16 %v933, %v920
        %v938 = vrot.slane %v936, 2
        %vm939 = vcmask 1041408
        %v942 = vsel %vm939, %v936, %v938
        %vm944 = vcmask 1041408
        %vm945 = vsmask.f32 1280
        %vm946 = vmand %vm944, %vm945
        %vm947 = vcmask 1043458
        %vm948 = vsmask.f32 3328
        %vm949 = vmand %vm947, %vm948
        %vm950 = vmor %vm949, %vm946
        %v951 = vld [vmem:[%s411] sm:$0xf]
        %v952 = vsel %vm950, %v942, %v951
        %953 = vst [vmem:[%s411] sm:$0xf] %v952
        %p954 = scmp.lt.s32.totalorder %s35, 7
        %s955 = scalar_select %p954, %s35, 7
        %s956 = smul.addr %s955, 2
        %s957 = smul.addr %s956, 2
        %s958 = scalar_lea.vmem %s8, %s957
        // Predicated region
        $region73: #{tpu_custom_call.1} parent=47 // pred_check
          %p959 = pneg %p210
        $region74: #{tpu_custom_call.1} parent=47 // pred_check_branch
          %961 = sbr.rel (%p959) target = $region76
        $region75: #{tpu_custom_call.1} parent=47 // pred_region
          _
        $region76: #{tpu_custom_call.1} parent=47 // pred_fallthru
          _
      $region48: #{tpu_custom_call.1} parent=5 // pred_fallthru
        _
      %p962 = scmp.le.s32.totalorder 2, %s30
      // Predicated region
      $region77: #{tpu_custom_call.1} parent=5 // pred_check
        %p963 = pneg %p962
      $region78: #{tpu_custom_call.1} parent=5 // pred_check_branch
        %965 = sbr.rel (%p963) target = $region80
      $region79: #{tpu_custom_call.1} parent=5 // pred_region
        %s966 = ssub.s32 %s30, 2
        // Predicated region
        $region81: #{tpu_custom_call.1} parent=79 // pred_check
          %p967 = pneg %p216
        $region82: #{tpu_custom_call.1} parent=79 // pred_check_branch
          %969 = sbr.rel (%p967) target = $region84
        $region83: #{tpu_custom_call.1} parent=79 // pred_region
          %p970 = scmp.lt.s32.totalorder %s36, 7
          %s971 = scalar_select %p970, %s36, 7
          %s972 = smul.addr %s971, 2
          %s973 = smul.addr %s972, 2
          %s974 = scalar_lea.vmem %s8, %s973
        $region84: #{tpu_custom_call.1} parent=79 // pred_fallthru
          _
      $region80: #{tpu_custom_call.1} parent=5 // pred_fallthru
        _
    $region6: #{tpu_custom_call.1} parent=1 // loop_footer
      %s34 = sadd.s32 1, %s30
    $region7: #{tpu_custom_call.1} parent=1 // loop_footer_branch
      %29 = sbr.rel target = $region3
    $region8: #{tpu_custom_call.1} parent=1 // loop_exit
      _
    %975 = vsyncpa [#allocation5], 1
    %s976 = scalar_lea.sflag [#allocation5], 1
    %977 = vsyncpa %s976, 1
    %978 = vsyncpa [#allocation7], 1
    %s979 = scalar_lea.sflag [#allocation7], 1
    %980 = vsyncpa %s979, 1
    %981 = vsyncpa [#allocation10], 1
    %982 = vsyncpa [#allocation13], 1

</llo_original>
